<compile_context>
chip_gen: v7x
topology: tpu7x:2x2x1
jax: 0.10.0
libtpu: 0.0.40
codegen_flags: <defaults>
</compile_context>

<pallas_src>
import jax
import jax.numpy as jnp
from jax import lax
from jax.experimental import pallas as pl
from jax.experimental.pallas import tpu as pltpu

# ---- module hyper-parameters (synthetic, small) -------------------------------
B = 2                      # batch
N = 8                      # sequence length (one sublane group)
D = 32                     # dim (must be divisible by groups)
K = 31                     # kernel_size (odd)
GROUPS = 16
CG = D // GROUPS           # channels per group (= 2; kernel specializes on this)
PAD = K // 2               # 15
LANES = 2 * B * D          # packed lanes: [same_b0 | cross_b0 | same_b1 | cross_b1] = 128

# Only taps whose window intersects the N valid rows contribute (the others read only the
# implicit zero padding); for N=8, K=31 that is k in [8, 22].
TAPS = tuple(k for k in range(K) if -(N - 1) <= k - PAD <= (N - 1))

# Row layout of the single coalesced [PACK_ROWS, LANES] f32 input slab (one DMA).
ROW_X = 0                  # N rows:  packed masked-able input
ROW_MASK = ROW_X + N       # N rows:  packed 0/1 mask
ROW_W1 = ROW_MASK + N      # K rows:  packed conv1 per-tap lane weights
ROW_W2 = ROW_W1 + K        # K rows:  packed conv2 per-tap lane weights
ROW_B = ROW_W2 + K         # 2 rows:  packed biases (conv1, conv2)
PACK_ROWS = ROW_B + 2      # = 80

assert CG == 2, "same/cross lane decomposition is specialized to D // groups == 2"
assert LANES == 128 and N == 8, "kernel is specialized to one (8, 128) vreg per stage"
assert len(TAPS) >= 4


def _mish_fast(x):
    # mish(x) = x * tanh(softplus(x)) = x * (1 - 2 / ((1 + e^x)^2 + 1)).
    # One EUP exp + one approx reciprocal (+1 Newton step) instead of exp -> log1p -> tanh.
    # Clamp at 20: for x > 20 the tanh factor rounds to 1.0 in f32 anyway, and the clamp keeps
    # (1 + e^x)^2 finite so the approx reciprocal never sees inf.
    t = jnp.exp(jnp.minimum(x, 20.0))
    u = 1.0 + t
    den = u * u + 1.0
    r = pl.reciprocal(den, approx=True)
    r = r * (2.0 - den * r)            # one Newton-Raphson step -> ~f32-exact 1/den
    return x * (1.0 - 2.0 * r)


# ---- Pallas kernel: conv1 + mish + conv2 + mish, whole batch, one invocation ----
def _conv_pos_emb_kernel(packed_ref, out_ref):
    # packed_ref: [PACK_ROWS, LANES] f32 coalesced inputs (row layout above)
    # out_ref:    [N, LANES]         lane-dense output slab
    lane = lax.broadcasted_iota(jnp.int32, (N, LANES), 1)
    row = lax.broadcasted_iota(jnp.int32, (N, LANES), 0)
    same_blk = (lane & (2 * D - 1)) < D          # lanes [0,32) U [64,96): "same"-channel blocks
    even_lane = (lane & 1) == 0

    def row1(r0):
        # single packed row, broadcast over sublanes by the consuming op
        return packed_ref[pl.ds(r0, 1), :]       # [1, LANES]

    mask = packed_ref[pl.ds(ROW_MASK, N), :]                       # [N, LANES]
    v = packed_ref[pl.ds(ROW_X, N), :] * mask                      # masked packed input (in regs)

    def conv_stage(w_row0, b_row, v, duplicate):
        # Grouped conv as per-tap VPU MACs on sublane-rolled windows of the register-resident
        # signal; 4 independent accumulators break the 15-deep serial mul+add chain.
        accs = [None, None, None, None]
        for j, k in enumerate(TAPS):
            off = k - PAD                                          # input-row offset of this tap
            if off == 0:
                win = v
            else:
                win = pltpu.roll(v, shift=(-off) % N, axis=0)      # win[n] = v[(n + off) mod N]
                # zero the rows whose source row is outside [0, N): the conv's zero padding
                valid = (row < N - off) if off > 0 else (row >= -off)
                win = jnp.where(valid, win, 0.0)
            contrib = win * row1(w_row0 + k)                       # per-tap MAC (VPU)
            i = j % 4
            accs[i] = contrib if accs[i] is None else accs[i] + contrib
        acc = (accs[0] + accs[1]) + (accs[2] + accs[3])

        # "Mix" (replaces the old 128x128 MXU matmul): out[o] = same[o] + cross[o^1].
        # Adjacent-lane pair swap + cross-block shift + add, all on the XLU roll slot.
        acc_sw = jnp.where(even_lane,
                           pltpu.roll(acc, shift=LANES - 1, axis=1),
                           pltpu.roll(acc, shift=1, axis=1))
        s = acc + pltpu.roll(acc_sw, shift=LANES - D, axis=1)
        h = _mish_fast(s + row1(b_row))
        if duplicate:
            # Re-duplicate each batch result into its cross block for the next stage's input.
            h = jnp.where(same_blk, h, pltpu.roll(h, shift=D, axis=1))
        return h

    h = conv_stage(ROW_W1, ROW_B, v, duplicate=True)
    y = conv_stage(ROW_W2, ROW_B + 1, h, duplicate=False)
    out_ref[...] = (y * mask).astype(out_ref.dtype)                # fused output mask, one store


# ---- wrapper-side layout plumbing (tiny, shape-only) ---------------------------
def _pack_grouped_weight(w):
    """[D, D//GROUPS, K] grouped Conv1d weight -> [K, LANES] per-tap lane vectors.

    same lane o : ws[k, o]    = w[o,   o % 2, k]  (multiplies x[.., o], lands at output o)
    cross lane o: wc_sw[k, o] = w[o^1, o % 2, k]  (multiplies x[.., o], lands at output o^1;
                                                   the in-kernel pair-swap roll routes it there)
    Lane packing = [ws | wc_sw | ws | wc_sw] (replicated for the two lane-packed batch items).
    """
    o = jnp.arange(D)
    ws = jnp.transpose(w[o, o % CG, :])                     # [K, D]
    wc_sw = jnp.transpose(w[o ^ 1, o % CG, :])              # [K, D]
    return jnp.concatenate([ws, wc_sw] * B, axis=-1)        # [K, LANES]


def _pack_inputs(x, mask, params):
    """Coalesce x, mask, weights and biases into one [PACK_ROWS, LANES] f32 slab (single DMA)."""
    w1, b1, w2, b2 = params
    x_packed = jnp.concatenate([x[b] for b in range(B) for _ in range(2)], axis=-1)  # [N, LANES]
    if mask is None:
        mask_packed = jnp.ones((N, LANES), jnp.float32)
    else:
        m = mask.astype(jnp.float32)                                                 # [B, N]
        mask_packed = jnp.concatenate(
            [jnp.broadcast_to(m[b][:, None], (N, 2 * D)) for b in range(B)], axis=-1)
    b_packed = jnp.stack([jnp.tile(b1, 2 * B), jnp.tile(b2, 2 * B)], axis=0)          # [2, LANES]
    return jnp.concatenate(
        [x_packed, mask_packed, _pack_grouped_weight(w1), _pack_grouped_weight(w2), b_packed],
        axis=0).astype(jnp.float32)                                                   # [80, LANES]


@jax.jit
def conv_position_embedding(x, mask, params):
    """x: [B, N, D] float32, mask: [B, N] bool or None.  Matches ConvPositionEmbedding.forward."""
    w1, b1, w2, b2 = params
    # trace-time shape validation (the packing below silently assumes these)
    assert x.shape == (B, N, D), x.shape
    assert mask is None or mask.shape == (B, N)
    assert w1.shape == (D, CG, K) and w2.shape == (D, CG, K)
    assert b1.shape == (D,) and b2.shape == (D,)

    packed = _pack_inputs(x, mask, params)

    y_slab = pl.pallas_call(
        _conv_pos_emb_kernel,
        out_shape=jax.ShapeDtypeStruct((N, LANES), x.dtype),
        in_specs=[pl.BlockSpec(memory_space=pltpu.MemorySpace.VMEM)],   # whole slab, one DMA
        out_specs=pl.BlockSpec(memory_space=pltpu.MemorySpace.VMEM),
    )(packed)

    # Un-pack the lane-dense slab back to [B, N, D] (pure slicing; XLA-side layout plumbing).
    return jnp.stack([y_slab[:, 2 * D * b:2 * D * b + D] for b in range(B)], axis=0)


# ---- pure-JAX reference (for sanity check) ------------------------------------
def _mish_ref(x):
    return x * jnp.tanh(jax.nn.softplus(x))


def _ref_grouped_conv1d(x_bnd, weight, bias):
    # x_bnd: [B, N, D]; weight: [D, D//G, K]; bias: [D]
    lhs = jnp.transpose(x_bnd, (0, 2, 1))                   # [B, D, N]
    out = lax.conv_general_dilated(
        lhs, weight, window_strides=(1,), padding=[(PAD, PAD)],
        dimension_numbers=('NCH', 'OIH', 'NCH'),
        feature_group_count=GROUPS)
    out = out + bias[None, :, None]
    return jnp.transpose(out, (0, 2, 1))                    # [B, N, D]


def _reference(x, mask, params):
    w1, b1, w2, b2 = params
    if mask is not None:
        x = jnp.where(mask[..., None], x, 0.0)
    h = _mish_ref(_ref_grouped_conv1d(x, w1, b1))
    y = _mish_ref(_ref_grouped_conv1d(h, w2, b2))
    if mask is not None:
        y = jnp.where(mask[..., None], y, 0.0)
    return y


if __name__ == "__main__":
    key = jax.random.PRNGKey(0)
    kx, k1, kb1, k2, kb2 = jax.random.split(key, 5)

    x = jax.random.normal(kx, (B, N, D), dtype=jnp.float32)
    # mask: first sequence fully valid, second has the last 3 timesteps masked out
    mask = jnp.arange(N)[None, :] < jnp.array([[N], [N - 3]])

    w1 = 0.1 * jax.random.normal(k1, (D, CG, K), dtype=jnp.float32)
    b1 = 0.1 * jax.random.normal(kb1, (D,), dtype=jnp.float32)
    w2 = 0.1 * jax.random.normal(k2, (D, CG, K), dtype=jnp.float32)
    b2 = 0.1 * jax.random.normal(kb2, (D,), dtype=jnp.float32)
    params = (w1, b1, w2, b2)

    out = jax.block_until_ready(conv_position_embedding(x, mask, params))
    ref = jax.block_until_ready(_reference(x, mask, params))

    assert out.shape == (B, N, D)
    err = float(jnp.max(jnp.abs(out - ref)))
    assert jnp.allclose(out, ref, atol=2e-4, rtol=2e-4), \
        f"mismatch vs JAX reference (max abs err {err:.3e})"

    print("KERNEL_OK")
</pallas_src>

<mosaic_0001>
module attributes {stable_mosaic.version = 11 : i64} {
  func.func @_conv_pos_emb_kernel(%arg0: memref<80x128xf32, #tpu.memory_space<vmem>>, %arg1: memref<8x128xf32, #tpu.memory_space<vmem>>) attributes {dimension_semantics = [], scalar_prefetch = 0 : i64, scratch_operands = 0 : i64, tpu.core_type = #tpu.core_type<tc>} {
    %0 = tpu.iota {dimensions = array<i32: 1>} : vector<8x128xi32>
    %1 = tpu.iota {dimensions = array<i32: 0>} : vector<8x128xi32>
    %c63_i32 = arith.constant 63 : i32
    %2 = vector.broadcast %c63_i32 : i32 to vector<8x128xi32>
    %3 = arith.andi %0, %2 : vector<8x128xi32>
    %c32_i32 = arith.constant 32 : i32
    %4 = vector.broadcast %c32_i32 : i32 to vector<8x128xi32>
    %5 = arith.cmpi slt, %3, %4 : vector<8x128xi32>
    %c1_i32 = arith.constant 1 : i32
    %6 = vector.broadcast %c1_i32 : i32 to vector<8x128xi32>
    %7 = arith.andi %0, %6 : vector<8x128xi32>
    %c0_i32 = arith.constant 0 : i32
    %8 = vector.broadcast %c0_i32 : i32 to vector<8x128xi32>
    %9 = arith.cmpi eq, %7, %8 : vector<8x128xi32>
    %c8 = arith.constant 8 : index
    %c0 = arith.constant 0 : index
    %10 = vector.load %arg0[%c8, %c0] : memref<80x128xf32, #tpu.memory_space<vmem>>, vector<8x128xf32>
    %c0_0 = arith.constant 0 : index
    %c0_1 = arith.constant 0 : index
    %11 = vector.load %arg0[%c0_0, %c0_1] : memref<80x128xf32, #tpu.memory_space<vmem>>, vector<8x128xf32>
    %12 = arith.mulf %11, %10 : vector<8x128xf32>
    %c7_i32 = arith.constant 7 : i32
    %13 = tpu.dynamic_rotate %12 by %c7_i32 dim 0 : vector<8x128xf32>, i32 -> vector<8x128xf32>
    %c7_i32_2 = arith.constant 7 : i32
    %14 = vector.broadcast %c7_i32_2 : i32 to vector<8x128xi32>
    %15 = arith.cmpi sge, %1, %14 : vector<8x128xi32>
    %cst = arith.constant 0.000000e+00 : f32
    %16 = vector.broadcast %cst : f32 to vector<8x128xf32>
    %17 = arith.select %15, %13, %16 : vector<8x128xi1>, vector<8x128xf32>
    %c24 = arith.constant 24 : index
    %c0_3 = arith.constant 0 : index
    %18 = vector.load %arg0[%c24, %c0_3] : memref<80x128xf32, #tpu.memory_space<vmem>>, vector<1x128xf32>
    %19 = vector.broadcast %18 : vector<1x128xf32> to vector<8x128xf32>
    %20 = arith.mulf %17, %19 : vector<8x128xf32>
    %c6_i32 = arith.constant 6 : i32
    %21 = tpu.dynamic_rotate %12 by %c6_i32 dim 0 : vector<8x128xf32>, i32 -> vector<8x128xf32>
    %c6_i32_4 = arith.constant 6 : i32
    %22 = vector.broadcast %c6_i32_4 : i32 to vector<8x128xi32>
    %23 = arith.cmpi sge, %1, %22 : vector<8x128xi32>
    %cst_5 = arith.constant 0.000000e+00 : f32
    %24 = vector.broadcast %cst_5 : f32 to vector<8x128xf32>
    %25 = arith.select %23, %21, %24 : vector<8x128xi1>, vector<8x128xf32>
    %c25 = arith.constant 25 : index
    %c0_6 = arith.constant 0 : index
    %26 = vector.load %arg0[%c25, %c0_6] : memref<80x128xf32, #tpu.memory_space<vmem>>, vector<1x128xf32>
    %27 = vector.broadcast %26 : vector<1x128xf32> to vector<8x128xf32>
    %28 = arith.mulf %25, %27 : vector<8x128xf32>
    %c5_i32 = arith.constant 5 : i32
    %29 = tpu.dynamic_rotate %12 by %c5_i32 dim 0 : vector<8x128xf32>, i32 -> vector<8x128xf32>
    %c5_i32_7 = arith.constant 5 : i32
    %30 = vector.broadcast %c5_i32_7 : i32 to vector<8x128xi32>
    %31 = arith.cmpi sge, %1, %30 : vector<8x128xi32>
    %cst_8 = arith.constant 0.000000e+00 : f32
    %32 = vector.broadcast %cst_8 : f32 to vector<8x128xf32>
    %33 = arith.select %31, %29, %32 : vector<8x128xi1>, vector<8x128xf32>
    %c26 = arith.constant 26 : index
    %c0_9 = arith.constant 0 : index
    %34 = vector.load %arg0[%c26, %c0_9] : memref<80x128xf32, #tpu.memory_space<vmem>>, vector<1x128xf32>
    %35 = vector.broadcast %34 : vector<1x128xf32> to vector<8x128xf32>
    %36 = arith.mulf %33, %35 : vector<8x128xf32>
    %c4_i32 = arith.constant 4 : i32
    %37 = tpu.dynamic_rotate %12 by %c4_i32 dim 0 : vector<8x128xf32>, i32 -> vector<8x128xf32>
    %c4_i32_10 = arith.constant 4 : i32
    %38 = vector.broadcast %c4_i32_10 : i32 to vector<8x128xi32>
    %39 = arith.cmpi sge, %1, %38 : vector<8x128xi32>
    %cst_11 = arith.constant 0.000000e+00 : f32
    %40 = vector.broadcast %cst_11 : f32 to vector<8x128xf32>
    %41 = arith.select %39, %37, %40 : vector<8x128xi1>, vector<8x128xf32>
    %c27 = arith.constant 27 : index
    %c0_12 = arith.constant 0 : index
    %42 = vector.load %arg0[%c27, %c0_12] : memref<80x128xf32, #tpu.memory_space<vmem>>, vector<1x128xf32>
    %43 = vector.broadcast %42 : vector<1x128xf32> to vector<8x128xf32>
    %44 = arith.mulf %41, %43 : vector<8x128xf32>
    %c3_i32 = arith.constant 3 : i32
    %45 = tpu.dynamic_rotate %12 by %c3_i32 dim 0 : vector<8x128xf32>, i32 -> vector<8x128xf32>
    %c3_i32_13 = arith.constant 3 : i32
    %46 = vector.broadcast %c3_i32_13 : i32 to vector<8x128xi32>
    %47 = arith.cmpi sge, %1, %46 : vector<8x128xi32>
    %cst_14 = arith.constant 0.000000e+00 : f32
    %48 = vector.broadcast %cst_14 : f32 to vector<8x128xf32>
    %49 = arith.select %47, %45, %48 : vector<8x128xi1>, vector<8x128xf32>
    %c28 = arith.constant 28 : index
    %c0_15 = arith.constant 0 : index
    %50 = vector.load %arg0[%c28, %c0_15] : memref<80x128xf32, #tpu.memory_space<vmem>>, vector<1x128xf32>
    %51 = vector.broadcast %50 : vector<1x128xf32> to vector<8x128xf32>
    %52 = arith.mulf %49, %51 : vector<8x128xf32>
    %53 = arith.addf %20, %52 : vector<8x128xf32>
    %c2_i32 = arith.constant 2 : i32
    %54 = tpu.dynamic_rotate %12 by %c2_i32 dim 0 : vector<8x128xf32>, i32 -> vector<8x128xf32>
    %c2_i32_16 = arith.constant 2 : i32
    %55 = vector.broadcast %c2_i32_16 : i32 to vector<8x128xi32>
    %56 = arith.cmpi sge, %1, %55 : vector<8x128xi32>
    %cst_17 = arith.constant 0.000000e+00 : f32
    %57 = vector.broadcast %cst_17 : f32 to vector<8x128xf32>
    %58 = arith.select %56, %54, %57 : vector<8x128xi1>, vector<8x128xf32>
    %c29 = arith.constant 29 : index
    %c0_18 = arith.constant 0 : index
    %59 = vector.load %arg0[%c29, %c0_18] : memref<80x128xf32, #tpu.memory_space<vmem>>, vector<1x128xf32>
    %60 = vector.broadcast %59 : vector<1x128xf32> to vector<8x128xf32>
    %61 = arith.mulf %58, %60 : vector<8x128xf32>
    %62 = arith.addf %28, %61 : vector<8x128xf32>
    %c1_i32_19 = arith.constant 1 : i32
    %63 = tpu.dynamic_rotate %12 by %c1_i32_19 dim 0 : vector<8x128xf32>, i32 -> vector<8x128xf32>
    %c1_i32_20 = arith.constant 1 : i32
    %64 = vector.broadcast %c1_i32_20 : i32 to vector<8x128xi32>
    %65 = arith.cmpi sge, %1, %64 : vector<8x128xi32>
    %cst_21 = arith.constant 0.000000e+00 : f32
    %66 = vector.broadcast %cst_21 : f32 to vector<8x128xf32>
    %67 = arith.select %65, %63, %66 : vector<8x128xi1>, vector<8x128xf32>
    %c30 = arith.constant 30 : index
    %c0_22 = arith.constant 0 : index
    %68 = vector.load %arg0[%c30, %c0_22] : memref<80x128xf32, #tpu.memory_space<vmem>>, vector<1x128xf32>
    %69 = vector.broadcast %68 : vector<1x128xf32> to vector<8x128xf32>
    %70 = arith.mulf %67, %69 : vector<8x128xf32>
    %71 = arith.addf %36, %70 : vector<8x128xf32>
    %c31 = arith.constant 31 : index
    %c0_23 = arith.constant 0 : index
    %72 = vector.load %arg0[%c31, %c0_23] : memref<80x128xf32, #tpu.memory_space<vmem>>, vector<1x128xf32>
    %73 = vector.broadcast %72 : vector<1x128xf32> to vector<8x128xf32>
    %74 = arith.mulf %12, %73 : vector<8x128xf32>
    %75 = arith.addf %44, %74 : vector<8x128xf32>
    %c7_i32_24 = arith.constant 7 : i32
    %76 = tpu.dynamic_rotate %12 by %c7_i32_24 dim 0 : vector<8x128xf32>, i32 -> vector<8x128xf32>
    %c7_i32_25 = arith.constant 7 : i32
    %77 = vector.broadcast %c7_i32_25 : i32 to vector<8x128xi32>
    %78 = arith.cmpi slt, %1, %77 : vector<8x128xi32>
    %cst_26 = arith.constant 0.000000e+00 : f32
    %79 = vector.broadcast %cst_26 : f32 to vector<8x128xf32>
    %80 = arith.select %78, %76, %79 : vector<8x128xi1>, vector<8x128xf32>
    %c32 = arith.constant 32 : index
    %c0_27 = arith.constant 0 : index
    %81 = vector.load %arg0[%c32, %c0_27] : memref<80x128xf32, #tpu.memory_space<vmem>>, vector<1x128xf32>
    %82 = vector.broadcast %81 : vector<1x128xf32> to vector<8x128xf32>
    %83 = arith.mulf %80, %82 : vector<8x128xf32>
    %84 = arith.addf %53, %83 : vector<8x128xf32>
    %c6_i32_28 = arith.constant 6 : i32
    %85 = tpu.dynamic_rotate %12 by %c6_i32_28 dim 0 : vector<8x128xf32>, i32 -> vector<8x128xf32>
    %c6_i32_29 = arith.constant 6 : i32
    %86 = vector.broadcast %c6_i32_29 : i32 to vector<8x128xi32>
    %87 = arith.cmpi slt, %1, %86 : vector<8x128xi32>
    %cst_30 = arith.constant 0.000000e+00 : f32
    %88 = vector.broadcast %cst_30 : f32 to vector<8x128xf32>
    %89 = arith.select %87, %85, %88 : vector<8x128xi1>, vector<8x128xf32>
    %c33 = arith.constant 33 : index
    %c0_31 = arith.constant 0 : index
    %90 = vector.load %arg0[%c33, %c0_31] : memref<80x128xf32, #tpu.memory_space<vmem>>, vector<1x128xf32>
    %91 = vector.broadcast %90 : vector<1x128xf32> to vector<8x128xf32>
    %92 = arith.mulf %89, %91 : vector<8x128xf32>
    %93 = arith.addf %62, %92 : vector<8x128xf32>
    %c5_i32_32 = arith.constant 5 : i32
    %94 = tpu.dynamic_rotate %12 by %c5_i32_32 dim 0 : vector<8x128xf32>, i32 -> vector<8x128xf32>
    %c5_i32_33 = arith.constant 5 : i32
    %95 = vector.broadcast %c5_i32_33 : i32 to vector<8x128xi32>
    %96 = arith.cmpi slt, %1, %95 : vector<8x128xi32>
    %cst_34 = arith.constant 0.000000e+00 : f32
    %97 = vector.broadcast %cst_34 : f32 to vector<8x128xf32>
    %98 = arith.select %96, %94, %97 : vector<8x128xi1>, vector<8x128xf32>
    %c34 = arith.constant 34 : index
    %c0_35 = arith.constant 0 : index
    %99 = vector.load %arg0[%c34, %c0_35] : memref<80x128xf32, #tpu.memory_space<vmem>>, vector<1x128xf32>
    %100 = vector.broadcast %99 : vector<1x128xf32> to vector<8x128xf32>
    %101 = arith.mulf %98, %100 : vector<8x128xf32>
    %102 = arith.addf %71, %101 : vector<8x128xf32>
    %c4_i32_36 = arith.constant 4 : i32
    %103 = tpu.dynamic_rotate %12 by %c4_i32_36 dim 0 : vector<8x128xf32>, i32 -> vector<8x128xf32>
    %c4_i32_37 = arith.constant 4 : i32
    %104 = vector.broadcast %c4_i32_37 : i32 to vector<8x128xi32>
    %105 = arith.cmpi slt, %1, %104 : vector<8x128xi32>
    %cst_38 = arith.constant 0.000000e+00 : f32
    %106 = vector.broadcast %cst_38 : f32 to vector<8x128xf32>
    %107 = arith.select %105, %103, %106 : vector<8x128xi1>, vector<8x128xf32>
    %c35 = arith.constant 35 : index
    %c0_39 = arith.constant 0 : index
    %108 = vector.load %arg0[%c35, %c0_39] : memref<80x128xf32, #tpu.memory_space<vmem>>, vector<1x128xf32>
    %109 = vector.broadcast %108 : vector<1x128xf32> to vector<8x128xf32>
    %110 = arith.mulf %107, %109 : vector<8x128xf32>
    %111 = arith.addf %75, %110 : vector<8x128xf32>
    %c3_i32_40 = arith.constant 3 : i32
    %112 = tpu.dynamic_rotate %12 by %c3_i32_40 dim 0 : vector<8x128xf32>, i32 -> vector<8x128xf32>
    %c3_i32_41 = arith.constant 3 : i32
    %113 = vector.broadcast %c3_i32_41 : i32 to vector<8x128xi32>
    %114 = arith.cmpi slt, %1, %113 : vector<8x128xi32>
    %cst_42 = arith.constant 0.000000e+00 : f32
    %115 = vector.broadcast %cst_42 : f32 to vector<8x128xf32>
    %116 = arith.select %114, %112, %115 : vector<8x128xi1>, vector<8x128xf32>
    %c36 = arith.constant 36 : index
    %c0_43 = arith.constant 0 : index
    %117 = vector.load %arg0[%c36, %c0_43] : memref<80x128xf32, #tpu.memory_space<vmem>>, vector<1x128xf32>
    %118 = vector.broadcast %117 : vector<1x128xf32> to vector<8x128xf32>
    %119 = arith.mulf %116, %118 : vector<8x128xf32>
    %120 = arith.addf %84, %119 : vector<8x128xf32>
    %c2_i32_44 = arith.constant 2 : i32
    %121 = tpu.dynamic_rotate %12 by %c2_i32_44 dim 0 : vector<8x128xf32>, i32 -> vector<8x128xf32>
    %c2_i32_45 = arith.constant 2 : i32
    %122 = vector.broadcast %c2_i32_45 : i32 to vector<8x128xi32>
    %123 = arith.cmpi slt, %1, %122 : vector<8x128xi32>
    %cst_46 = arith.constant 0.000000e+00 : f32
    %124 = vector.broadcast %cst_46 : f32 to vector<8x128xf32>
    %125 = arith.select %123, %121, %124 : vector<8x128xi1>, vector<8x128xf32>
    %c37 = arith.constant 37 : index
    %c0_47 = arith.constant 0 : index
    %126 = vector.load %arg0[%c37, %c0_47] : memref<80x128xf32, #tpu.memory_space<vmem>>, vector<1x128xf32>
    %127 = vector.broadcast %126 : vector<1x128xf32> to vector<8x128xf32>
    %128 = arith.mulf %125, %127 : vector<8x128xf32>
    %129 = arith.addf %93, %128 : vector<8x128xf32>
    %c1_i32_48 = arith.constant 1 : i32
    %130 = tpu.dynamic_rotate %12 by %c1_i32_48 dim 0 : vector<8x128xf32>, i32 -> vector<8x128xf32>
    %c1_i32_49 = arith.constant 1 : i32
    %131 = vector.broadcast %c1_i32_49 : i32 to vector<8x128xi32>
    %132 = arith.cmpi slt, %1, %131 : vector<8x128xi32>
    %cst_50 = arith.constant 0.000000e+00 : f32
    %133 = vector.broadcast %cst_50 : f32 to vector<8x128xf32>
    %134 = arith.select %132, %130, %133 : vector<8x128xi1>, vector<8x128xf32>
    %c38 = arith.constant 38 : index
    %c0_51 = arith.constant 0 : index
    %135 = vector.load %arg0[%c38, %c0_51] : memref<80x128xf32, #tpu.memory_space<vmem>>, vector<1x128xf32>
    %136 = vector.broadcast %135 : vector<1x128xf32> to vector<8x128xf32>
    %137 = arith.mulf %134, %136 : vector<8x128xf32>
    %138 = arith.addf %102, %137 : vector<8x128xf32>
    %139 = arith.addf %120, %129 : vector<8x128xf32>
    %140 = arith.addf %138, %111 : vector<8x128xf32>
    %141 = arith.addf %139, %140 : vector<8x128xf32>
    %c127_i32 = arith.constant 127 : i32
    %142 = tpu.dynamic_rotate %141 by %c127_i32 dim 1 : vector<8x128xf32>, i32 -> vector<8x128xf32>
    %c1_i32_52 = arith.constant 1 : i32
    %143 = tpu.dynamic_rotate %141 by %c1_i32_52 dim 1 : vector<8x128xf32>, i32 -> vector<8x128xf32>
    %144 = arith.select %9, %142, %143 : vector<8x128xi1>, vector<8x128xf32>
    %c96_i32 = arith.constant 96 : i32
    %145 = tpu.dynamic_rotate %144 by %c96_i32 dim 1 : vector<8x128xf32>, i32 -> vector<8x128xf32>
    %146 = arith.addf %141, %145 : vector<8x128xf32>
    %c78 = arith.constant 78 : index
    %c0_53 = arith.constant 0 : index
    %147 = vector.load %arg0[%c78, %c0_53] : memref<80x128xf32, #tpu.memory_space<vmem>>, vector<1x128xf32>
    %148 = vector.broadcast %147 : vector<1x128xf32> to vector<8x128xf32>
    %149 = arith.addf %146, %148 : vector<8x128xf32>
    %cst_54 = arith.constant 2.000000e+01 : f32
    %150 = vector.broadcast %cst_54 : f32 to vector<8x128xf32>
    %151 = arith.minimumf %149, %150 : vector<8x128xf32>
    %152 = math.exp %151 : vector<8x128xf32>
    %cst_55 = arith.constant 1.000000e+00 : f32
    %153 = vector.broadcast %cst_55 : f32 to vector<8x128xf32>
    %154 = arith.addf %153, %152 : vector<8x128xf32>
    %155 = arith.mulf %154, %154 : vector<8x128xf32>
    %cst_56 = arith.constant 1.000000e+00 : f32
    %156 = vector.broadcast %cst_56 : f32 to vector<8x128xf32>
    %157 = arith.addf %155, %156 : vector<8x128xf32>
    %158 = tpu.reciprocal %157 {approx = true} : vector<8x128xf32> -> vector<8x128xf32>
    %159 = arith.mulf %157, %158 : vector<8x128xf32>
    %cst_57 = arith.constant 2.000000e+00 : f32
    %160 = vector.broadcast %cst_57 : f32 to vector<8x128xf32>
    %161 = arith.subf %160, %159 : vector<8x128xf32>
    %162 = arith.mulf %158, %161 : vector<8x128xf32>
    %cst_58 = arith.constant 2.000000e+00 : f32
    %163 = vector.broadcast %cst_58 : f32 to vector<8x128xf32>
    %164 = arith.mulf %163, %162 : vector<8x128xf32>
    %cst_59 = arith.constant 1.000000e+00 : f32
    %165 = vector.broadcast %cst_59 : f32 to vector<8x128xf32>
    %166 = arith.subf %165, %164 : vector<8x128xf32>
    %167 = arith.mulf %149, %166 : vector<8x128xf32>
    %c32_i32_60 = arith.constant 32 : i32
    %168 = tpu.dynamic_rotate %167 by %c32_i32_60 dim 1 : vector<8x128xf32>, i32 -> vector<8x128xf32>
    %169 = arith.select %5, %167, %168 : vector<8x128xi1>, vector<8x128xf32>
    %c7_i32_61 = arith.constant 7 : i32
    %170 = tpu.dynamic_rotate %169 by %c7_i32_61 dim 0 : vector<8x128xf32>, i32 -> vector<8x128xf32>
    %c7_i32_62 = arith.constant 7 : i32
    %171 = vector.broadcast %c7_i32_62 : i32 to vector<8x128xi32>
    %172 = arith.cmpi sge, %1, %171 : vector<8x128xi32>
    %cst_63 = arith.constant 0.000000e+00 : f32
    %173 = vector.broadcast %cst_63 : f32 to vector<8x128xf32>
    %174 = arith.select %172, %170, %173 : vector<8x128xi1>, vector<8x128xf32>
    %c55 = arith.constant 55 : index
    %c0_64 = arith.constant 0 : index
    %175 = vector.load %arg0[%c55, %c0_64] : memref<80x128xf32, #tpu.memory_space<vmem>>, vector<1x128xf32>
    %176 = vector.broadcast %175 : vector<1x128xf32> to vector<8x128xf32>
    %177 = arith.mulf %174, %176 : vector<8x128xf32>
    %c6_i32_65 = arith.constant 6 : i32
    %178 = tpu.dynamic_rotate %169 by %c6_i32_65 dim 0 : vector<8x128xf32>, i32 -> vector<8x128xf32>
    %c6_i32_66 = arith.constant 6 : i32
    %179 = vector.broadcast %c6_i32_66 : i32 to vector<8x128xi32>
    %180 = arith.cmpi sge, %1, %179 : vector<8x128xi32>
    %cst_67 = arith.constant 0.000000e+00 : f32
    %181 = vector.broadcast %cst_67 : f32 to vector<8x128xf32>
    %182 = arith.select %180, %178, %181 : vector<8x128xi1>, vector<8x128xf32>
    %c56 = arith.constant 56 : index
    %c0_68 = arith.constant 0 : index
    %183 = vector.load %arg0[%c56, %c0_68] : memref<80x128xf32, #tpu.memory_space<vmem>>, vector<1x128xf32>
    %184 = vector.broadcast %183 : vector<1x128xf32> to vector<8x128xf32>
    %185 = arith.mulf %182, %184 : vector<8x128xf32>
    %c5_i32_69 = arith.constant 5 : i32
    %186 = tpu.dynamic_rotate %169 by %c5_i32_69 dim 0 : vector<8x128xf32>, i32 -> vector<8x128xf32>
    %c5_i32_70 = arith.constant 5 : i32
    %187 = vector.broadcast %c5_i32_70 : i32 to vector<8x128xi32>
    %188 = arith.cmpi sge, %1, %187 : vector<8x128xi32>
    %cst_71 = arith.constant 0.000000e+00 : f32
    %189 = vector.broadcast %cst_71 : f32 to vector<8x128xf32>
    %190 = arith.select %188, %186, %189 : vector<8x128xi1>, vector<8x128xf32>
    %c57 = arith.constant 57 : index
    %c0_72 = arith.constant 0 : index
    %191 = vector.load %arg0[%c57, %c0_72] : memref<80x128xf32, #tpu.memory_space<vmem>>, vector<1x128xf32>
    %192 = vector.broadcast %191 : vector<1x128xf32> to vector<8x128xf32>
    %193 = arith.mulf %190, %192 : vector<8x128xf32>
    %c4_i32_73 = arith.constant 4 : i32
    %194 = tpu.dynamic_rotate %169 by %c4_i32_73 dim 0 : vector<8x128xf32>, i32 -> vector<8x128xf32>
    %c4_i32_74 = arith.constant 4 : i32
    %195 = vector.broadcast %c4_i32_74 : i32 to vector<8x128xi32>
    %196 = arith.cmpi sge, %1, %195 : vector<8x128xi32>
    %cst_75 = arith.constant 0.000000e+00 : f32
    %197 = vector.broadcast %cst_75 : f32 to vector<8x128xf32>
    %198 = arith.select %196, %194, %197 : vector<8x128xi1>, vector<8x128xf32>
    %c58 = arith.constant 58 : index
    %c0_76 = arith.constant 0 : index
    %199 = vector.load %arg0[%c58, %c0_76] : memref<80x128xf32, #tpu.memory_space<vmem>>, vector<1x128xf32>
    %200 = vector.broadcast %199 : vector<1x128xf32> to vector<8x128xf32>
    %201 = arith.mulf %198, %200 : vector<8x128xf32>
    %c3_i32_77 = arith.constant 3 : i32
    %202 = tpu.dynamic_rotate %169 by %c3_i32_77 dim 0 : vector<8x128xf32>, i32 -> vector<8x128xf32>
    %c3_i32_78 = arith.constant 3 : i32
    %203 = vector.broadcast %c3_i32_78 : i32 to vector<8x128xi32>
    %204 = arith.cmpi sge, %1, %203 : vector<8x128xi32>
    %cst_79 = arith.constant 0.000000e+00 : f32
    %205 = vector.broadcast %cst_79 : f32 to vector<8x128xf32>
    %206 = arith.select %204, %202, %205 : vector<8x128xi1>, vector<8x128xf32>
    %c59 = arith.constant 59 : index
    %c0_80 = arith.constant 0 : index
    %207 = vector.load %arg0[%c59, %c0_80] : memref<80x128xf32, #tpu.memory_space<vmem>>, vector<1x128xf32>
    %208 = vector.broadcast %207 : vector<1x128xf32> to vector<8x128xf32>
    %209 = arith.mulf %206, %208 : vector<8x128xf32>
    %210 = arith.addf %177, %209 : vector<8x128xf32>
    %c2_i32_81 = arith.constant 2 : i32
    %211 = tpu.dynamic_rotate %169 by %c2_i32_81 dim 0 : vector<8x128xf32>, i32 -> vector<8x128xf32>
    %c2_i32_82 = arith.constant 2 : i32
    %212 = vector.broadcast %c2_i32_82 : i32 to vector<8x128xi32>
    %213 = arith.cmpi sge, %1, %212 : vector<8x128xi32>
    %cst_83 = arith.constant 0.000000e+00 : f32
    %214 = vector.broadcast %cst_83 : f32 to vector<8x128xf32>
    %215 = arith.select %213, %211, %214 : vector<8x128xi1>, vector<8x128xf32>
    %c60 = arith.constant 60 : index
    %c0_84 = arith.constant 0 : index
    %216 = vector.load %arg0[%c60, %c0_84] : memref<80x128xf32, #tpu.memory_space<vmem>>, vector<1x128xf32>
    %217 = vector.broadcast %216 : vector<1x128xf32> to vector<8x128xf32>
    %218 = arith.mulf %215, %217 : vector<8x128xf32>
    %219 = arith.addf %185, %218 : vector<8x128xf32>
    %c1_i32_85 = arith.constant 1 : i32
    %220 = tpu.dynamic_rotate %169 by %c1_i32_85 dim 0 : vector<8x128xf32>, i32 -> vector<8x128xf32>
    %c1_i32_86 = arith.constant 1 : i32
    %221 = vector.broadcast %c1_i32_86 : i32 to vector<8x128xi32>
    %222 = arith.cmpi sge, %1, %221 : vector<8x128xi32>
    %cst_87 = arith.constant 0.000000e+00 : f32
    %223 = vector.broadcast %cst_87 : f32 to vector<8x128xf32>
    %224 = arith.select %222, %220, %223 : vector<8x128xi1>, vector<8x128xf32>
    %c61 = arith.constant 61 : index
    %c0_88 = arith.constant 0 : index
    %225 = vector.load %arg0[%c61, %c0_88] : memref<80x128xf32, #tpu.memory_space<vmem>>, vector<1x128xf32>
    %226 = vector.broadcast %225 : vector<1x128xf32> to vector<8x128xf32>
    %227 = arith.mulf %224, %226 : vector<8x128xf32>
    %228 = arith.addf %193, %227 : vector<8x128xf32>
    %c62 = arith.constant 62 : index
    %c0_89 = arith.constant 0 : index
    %229 = vector.load %arg0[%c62, %c0_89] : memref<80x128xf32, #tpu.memory_space<vmem>>, vector<1x128xf32>
    %230 = vector.broadcast %229 : vector<1x128xf32> to vector<8x128xf32>
    %231 = arith.mulf %169, %230 : vector<8x128xf32>
    %232 = arith.addf %201, %231 : vector<8x128xf32>
    %c7_i32_90 = arith.constant 7 : i32
    %233 = tpu.dynamic_rotate %169 by %c7_i32_90 dim 0 : vector<8x128xf32>, i32 -> vector<8x128xf32>
    %c7_i32_91 = arith.constant 7 : i32
    %234 = vector.broadcast %c7_i32_91 : i32 to vector<8x128xi32>
    %235 = arith.cmpi slt, %1, %234 : vector<8x128xi32>
    %cst_92 = arith.constant 0.000000e+00 : f32
    %236 = vector.broadcast %cst_92 : f32 to vector<8x128xf32>
    %237 = arith.select %235, %233, %236 : vector<8x128xi1>, vector<8x128xf32>
    %c63 = arith.constant 63 : index
    %c0_93 = arith.constant 0 : index
    %238 = vector.load %arg0[%c63, %c0_93] : memref<80x128xf32, #tpu.memory_space<vmem>>, vector<1x128xf32>
    %239 = vector.broadcast %238 : vector<1x128xf32> to vector<8x128xf32>
    %240 = arith.mulf %237, %239 : vector<8x128xf32>
    %241 = arith.addf %210, %240 : vector<8x128xf32>
    %c6_i32_94 = arith.constant 6 : i32
    %242 = tpu.dynamic_rotate %169 by %c6_i32_94 dim 0 : vector<8x128xf32>, i32 -> vector<8x128xf32>
    %c6_i32_95 = arith.constant 6 : i32
    %243 = vector.broadcast %c6_i32_95 : i32 to vector<8x128xi32>
    %244 = arith.cmpi slt, %1, %243 : vector<8x128xi32>
    %cst_96 = arith.constant 0.000000e+00 : f32
    %245 = vector.broadcast %cst_96 : f32 to vector<8x128xf32>
    %246 = arith.select %244, %242, %245 : vector<8x128xi1>, vector<8x128xf32>
    %c64 = arith.constant 64 : index
    %c0_97 = arith.constant 0 : index
    %247 = vector.load %arg0[%c64, %c0_97] : memref<80x128xf32, #tpu.memory_space<vmem>>, vector<1x128xf32>
    %248 = vector.broadcast %247 : vector<1x128xf32> to vector<8x128xf32>
    %249 = arith.mulf %246, %248 : vector<8x128xf32>
    %250 = arith.addf %219, %249 : vector<8x128xf32>
    %c5_i32_98 = arith.constant 5 : i32
    %251 = tpu.dynamic_rotate %169 by %c5_i32_98 dim 0 : vector<8x128xf32>, i32 -> vector<8x128xf32>
    %c5_i32_99 = arith.constant 5 : i32
    %252 = vector.broadcast %c5_i32_99 : i32 to vector<8x128xi32>
    %253 = arith.cmpi slt, %1, %252 : vector<8x128xi32>
    %cst_100 = arith.constant 0.000000e+00 : f32
    %254 = vector.broadcast %cst_100 : f32 to vector<8x128xf32>
    %255 = arith.select %253, %251, %254 : vector<8x128xi1>, vector<8x128xf32>
    %c65 = arith.constant 65 : index
    %c0_101 = arith.constant 0 : index
    %256 = vector.load %arg0[%c65, %c0_101] : memref<80x128xf32, #tpu.memory_space<vmem>>, vector<1x128xf32>
    %257 = vector.broadcast %256 : vector<1x128xf32> to vector<8x128xf32>
    %258 = arith.mulf %255, %257 : vector<8x128xf32>
    %259 = arith.addf %228, %258 : vector<8x128xf32>
    %c4_i32_102 = arith.constant 4 : i32
    %260 = tpu.dynamic_rotate %169 by %c4_i32_102 dim 0 : vector<8x128xf32>, i32 -> vector<8x128xf32>
    %c4_i32_103 = arith.constant 4 : i32
    %261 = vector.broadcast %c4_i32_103 : i32 to vector<8x128xi32>
    %262 = arith.cmpi slt, %1, %261 : vector<8x128xi32>
    %cst_104 = arith.constant 0.000000e+00 : f32
    %263 = vector.broadcast %cst_104 : f32 to vector<8x128xf32>
    %264 = arith.select %262, %260, %263 : vector<8x128xi1>, vector<8x128xf32>
    %c66 = arith.constant 66 : index
    %c0_105 = arith.constant 0 : index
    %265 = vector.load %arg0[%c66, %c0_105] : memref<80x128xf32, #tpu.memory_space<vmem>>, vector<1x128xf32>
    %266 = vector.broadcast %265 : vector<1x128xf32> to vector<8x128xf32>
    %267 = arith.mulf %264, %266 : vector<8x128xf32>
    %268 = arith.addf %232, %267 : vector<8x128xf32>
    %c3_i32_106 = arith.constant 3 : i32
    %269 = tpu.dynamic_rotate %169 by %c3_i32_106 dim 0 : vector<8x128xf32>, i32 -> vector<8x128xf32>
    %c3_i32_107 = arith.constant 3 : i32
    %270 = vector.broadcast %c3_i32_107 : i32 to vector<8x128xi32>
    %271 = arith.cmpi slt, %1, %270 : vector<8x128xi32>
    %cst_108 = arith.constant 0.000000e+00 : f32
    %272 = vector.broadcast %cst_108 : f32 to vector<8x128xf32>
    %273 = arith.select %271, %269, %272 : vector<8x128xi1>, vector<8x128xf32>
    %c67 = arith.constant 67 : index
    %c0_109 = arith.constant 0 : index
    %274 = vector.load %arg0[%c67, %c0_109] : memref<80x128xf32, #tpu.memory_space<vmem>>, vector<1x128xf32>
    %275 = vector.broadcast %274 : vector<1x128xf32> to vector<8x128xf32>
    %276 = arith.mulf %273, %275 : vector<8x128xf32>
    %277 = arith.addf %241, %276 : vector<8x128xf32>
    %c2_i32_110 = arith.constant 2 : i32
    %278 = tpu.dynamic_rotate %169 by %c2_i32_110 dim 0 : vector<8x128xf32>, i32 -> vector<8x128xf32>
    %c2_i32_111 = arith.constant 2 : i32
    %279 = vector.broadcast %c2_i32_111 : i32 to vector<8x128xi32>
    %280 = arith.cmpi slt, %1, %279 : vector<8x128xi32>
    %cst_112 = arith.constant 0.000000e+00 : f32
    %281 = vector.broadcast %cst_112 : f32 to vector<8x128xf32>
    %282 = arith.select %280, %278, %281 : vector<8x128xi1>, vector<8x128xf32>
    %c68 = arith.constant 68 : index
    %c0_113 = arith.constant 0 : index
    %283 = vector.load %arg0[%c68, %c0_113] : memref<80x128xf32, #tpu.memory_space<vmem>>, vector<1x128xf32>
    %284 = vector.broadcast %283 : vector<1x128xf32> to vector<8x128xf32>
    %285 = arith.mulf %282, %284 : vector<8x128xf32>
    %286 = arith.addf %250, %285 : vector<8x128xf32>
    %c1_i32_114 = arith.constant 1 : i32
    %287 = tpu.dynamic_rotate %169 by %c1_i32_114 dim 0 : vector<8x128xf32>, i32 -> vector<8x128xf32>
    %c1_i32_115 = arith.constant 1 : i32
    %288 = vector.broadcast %c1_i32_115 : i32 to vector<8x128xi32>
    %289 = arith.cmpi slt, %1, %288 : vector<8x128xi32>
    %cst_116 = arith.constant 0.000000e+00 : f32
    %290 = vector.broadcast %cst_116 : f32 to vector<8x128xf32>
    %291 = arith.select %289, %287, %290 : vector<8x128xi1>, vector<8x128xf32>
    %c69 = arith.constant 69 : index
    %c0_117 = arith.constant 0 : index
    %292 = vector.load %arg0[%c69, %c0_117] : memref<80x128xf32, #tpu.memory_space<vmem>>, vector<1x128xf32>
    %293 = vector.broadcast %292 : vector<1x128xf32> to vector<8x128xf32>
    %294 = arith.mulf %291, %293 : vector<8x128xf32>
    %295 = arith.addf %259, %294 : vector<8x128xf32>
    %296 = arith.addf %277, %286 : vector<8x128xf32>
    %297 = arith.addf %295, %268 : vector<8x128xf32>
    %298 = arith.addf %296, %297 : vector<8x128xf32>
    %c127_i32_118 = arith.constant 127 : i32
    %299 = tpu.dynamic_rotate %298 by %c127_i32_118 dim 1 : vector<8x128xf32>, i32 -> vector<8x128xf32>
    %c1_i32_119 = arith.constant 1 : i32
    %300 = tpu.dynamic_rotate %298 by %c1_i32_119 dim 1 : vector<8x128xf32>, i32 -> vector<8x128xf32>
    %301 = arith.select %9, %299, %300 : vector<8x128xi1>, vector<8x128xf32>
    %c96_i32_120 = arith.constant 96 : i32
    %302 = tpu.dynamic_rotate %301 by %c96_i32_120 dim 1 : vector<8x128xf32>, i32 -> vector<8x128xf32>
    %303 = arith.addf %298, %302 : vector<8x128xf32>
    %c79 = arith.constant 79 : index
    %c0_121 = arith.constant 0 : index
    %304 = vector.load %arg0[%c79, %c0_121] : memref<80x128xf32, #tpu.memory_space<vmem>>, vector<1x128xf32>
    %305 = vector.broadcast %304 : vector<1x128xf32> to vector<8x128xf32>
    %306 = arith.addf %303, %305 : vector<8x128xf32>
    %cst_122 = arith.constant 2.000000e+01 : f32
    %307 = vector.broadcast %cst_122 : f32 to vector<8x128xf32>
    %308 = arith.minimumf %306, %307 : vector<8x128xf32>
    %309 = math.exp %308 : vector<8x128xf32>
    %cst_123 = arith.constant 1.000000e+00 : f32
    %310 = vector.broadcast %cst_123 : f32 to vector<8x128xf32>
    %311 = arith.addf %310, %309 : vector<8x128xf32>
    %312 = arith.mulf %311, %311 : vector<8x128xf32>
    %cst_124 = arith.constant 1.000000e+00 : f32
    %313 = vector.broadcast %cst_124 : f32 to vector<8x128xf32>
    %314 = arith.addf %312, %313 : vector<8x128xf32>
    %315 = tpu.reciprocal %314 {approx = true} : vector<8x128xf32> -> vector<8x128xf32>
    %316 = arith.mulf %314, %315 : vector<8x128xf32>
    %cst_125 = arith.constant 2.000000e+00 : f32
    %317 = vector.broadcast %cst_125 : f32 to vector<8x128xf32>
    %318 = arith.subf %317, %316 : vector<8x128xf32>
    %319 = arith.mulf %315, %318 : vector<8x128xf32>
    %cst_126 = arith.constant 2.000000e+00 : f32
    %320 = vector.broadcast %cst_126 : f32 to vector<8x128xf32>
    %321 = arith.mulf %320, %319 : vector<8x128xf32>
    %cst_127 = arith.constant 1.000000e+00 : f32
    %322 = vector.broadcast %cst_127 : f32 to vector<8x128xf32>
    %323 = arith.subf %322, %321 : vector<8x128xf32>
    %324 = arith.mulf %306, %323 : vector<8x128xf32>
    %325 = arith.mulf %324, %10 : vector<8x128xf32>
    %c0_128 = arith.constant 0 : index
    %c0_129 = arith.constant 0 : index
    %326 = vector.load %arg1[%c0_128, %c0_129] : memref<8x128xf32, #tpu.memory_space<vmem>>, vector<8x128xf32>
    tpu.vector_store %arg1[%c0_128, %c0_129], %325 {strides = array<i32>} : memref<8x128xf32, #tpu.memory_space<vmem>>, vector<8x128xf32>,
    return
  }
}

</mosaic_0001>

<llo_original>
// kernel: tile.13
$region0: #{tile.13}
  #allocation0 [shape = 's32[1]{0}', space=sflag, size = 0x4, scoped, tag = 'scoped memory for tile.13']
  %s0 = inlined_call_operand.vmem [shape: f32[32], index: 0, kind: input, shape index: {}]
  %s1 = inlined_call_operand.vmem [shape: f32[4,32], index: 1, kind: output, shape index: {}]
  // Predicated region
  $region2: #{tile.13} parent=0 // pred_check
    _
  $region3: #{tile.13} parent=0 // pred_check_branch
    %3 = sbr.rel (0) target = $region5
  $region4: #{tile.13} parent=0 // pred_region
    _
  $region5: #{tile.13} parent=0 // pred_fallthru
    _
  %v4 = vld [vmem:[%s0] ss:$0 sm:$0xff]
  %5 = vst [vmem:[%s1] sm:$0xf] %v4

// kernel: tile.18
$region0: #{tile.18}
  %s0 = inlined_call_operand.vmem [shape: f32[4,32], index: 0, kind: input, shape index: {}]
  %s1 = inlined_call_operand.vmem [shape: f32[1,128], index: 1, kind: output, shape index: {}]
  $region1: #{tile.18} parent=0
    #allocation0 [shape = 'u8[4096]{0}', space=vmem, size = 0x1000, scoped, tag = 'scoped mem for output reshape']
    #allocation1 [shape = 'u8[4096]{0}', space=vmem, size = 0x1000, scoped, tag = 'scoped mem for input reshape']
    %s3 = sshllo.u32 0, 4
    %v4 = vld [vmem:[%s0] sm:%s3]
    %5 = vst [vmem:[#allocation1] sm:%s3] %v4
    %v6 = vld [vmem:[#allocation1] sm:$0x1]
    %vm7 = vcmask 261120
    %8 = vst.msk [vmem:[#allocation0] sm:$0x1] %vm7, %v6
    %s9 = scalar_lea.vmem [#allocation1], 3
    %v10 = vld [vmem:[%s9] sm:$0x1]
    %11 = vrot.lane.b32.xlu0 %v10, 96
    %v12 = vpop.permute.xlu0 %11
    %vm13 = vcmask 1048320
    %14 = vst.msk [vmem:[#allocation0] sm:$0x1] %vm13, %v12
    %s15 = scalar_lea.vmem [#allocation1], 2
    %v16 = vld [vmem:[%s15] sm:$0x1]
    %17 = vrot.lane.b32.xlu0 %v16, 64
    %v18 = vpop.permute.xlu0 %17
    %vm19 = vcmask 785920
    %20 = vst.msk [vmem:[#allocation0] sm:$0x1] %vm19, %v18
    %s21 = scalar_lea.vmem [#allocation1], 1
    %v22 = vld [vmem:[%s21] sm:$0x1]
    %23 = vrot.lane.b32.xlu0 %v22, 32
    %v24 = vpop.permute.xlu0 %23
    %vm25 = vcmask 523520
    %26 = vst.msk [vmem:[#allocation0] sm:$0x1] %vm25, %v24
    %s28 = sshllo.u32 0, 1
    %v30 = vld [vmem:[#allocation0] sm:%s28]
    %s31 = sshllo.u32 0, 1
    %32 = vst [vmem:[%s1] sm:%s31] %v30

// kernel: conv_position_embedding.1
$region0: #{conv_position_embedding.1}
  #allocation0 [shape = 'u32[]', space=smem, size = 0x4, offset = 0x4, fixed_abs, tag = 'smem constant byte address 0x4 - core index']
  #allocation1 [shape = 'u32[144,128]{1,0:T(1,128)}', space=vmem, size = 0x12000, scoped, tag = 'internal scratch']
  %s0 = inlined_call_operand.vmem [shape: f32[80,128], index: 0, kind: input, shape index: {}]
  %s1 = inlined_call_operand.vmem [shape: f32[8,128], index: 1, kind: output, shape index: {}]
  %s2 = sld [smem:[#allocation0]]
  $region14: #{conv_position_embedding.1} parent=0
    _
  %s4 = ssub.s32 1, %s2
  %s5 = scalar_select 0, %s4, %s2
  // Predicated region
  $region2: #{conv_position_embedding.1} parent=0 // pred_check
    _
  $region3: #{conv_position_embedding.1} parent=0 // pred_check_branch
    %7 = sbr.rel (0) target = $region5
  $region4: #{conv_position_embedding.1} parent=0 // pred_region
    _
  $region5: #{conv_position_embedding.1} parent=0 // pred_fallthru
    _
  %v8 = vlaneseq
  %v9 = vand.u32 %v8, 127
  %v10 = vlaneseq
  %v11 = vshrl.u32 %v10, 7
  %v12 = vand.u32 %v9, 63
  %vm13 = vcmp.lt.s32.totalorder %v12, 32
  %v14 = vand.u32 %v9, 1
  %vm15 = vcmp.eq.s32.totalorder %v14, 0
  %v16 = vld [vmem:[%s0 + $0x8] sm:$0xff]
  %v17 = vld [vmem:[%s0] sm:$0xff]
  %v18 = vmul.f32 %v17, %v16
  %v19 = vrot.slane %v18, 1
  %vm20 = vcmp.ge.s32.totalorder %v11, 7
  %v21 = vsel %vm20, %v19, 0.0
  %v22 = vld [vmem:[%s0 + $0x18] sm:$0x1]
  %v23 = vlaneseq
  %v24 = vshrl.u32 %v23, 7
  %v25 = vsub.s32 0, %v24
  %v26 = vrot.slane %v22, %v25
  %v27 = vmul.f32 %v21, %v26
  %v28 = vrot.slane %v18, 2
  %vm29 = vcmp.ge.s32.totalorder %v11, 6
  %v30 = vsel %vm29, %v28, 0.0
  %v31 = vld [vmem:[%s0 + $0x19] sm:$0x1]
  %v32 = vlaneseq
  %v33 = vshrl.u32 %v32, 7
  %v34 = vsub.s32 0, %v33
  %v35 = vrot.slane %v31, %v34
  %v36 = vmul.f32 %v30, %v35
  %v37 = vrot.slane %v18, 3
  %vm38 = vcmp.ge.s32.totalorder %v11, 5
  %v39 = vsel %vm38, %v37, 0.0
  %v40 = vld [vmem:[%s0 + $0x1a] sm:$0x1]
  %v41 = vlaneseq
  %v42 = vshrl.u32 %v41, 7
  %v43 = vsub.s32 0, %v42
  %v44 = vrot.slane %v40, %v43
  %v45 = vmul.f32 %v39, %v44
  %v46 = vrot.slane %v18, 4
  %vm47 = vcmp.ge.s32.totalorder %v11, 4
  %v48 = vsel %vm47, %v46, 0.0
  %v49 = vld [vmem:[%s0 + $0x1b] sm:$0x1]
  %v50 = vlaneseq
  %v51 = vshrl.u32 %v50, 7
  %v52 = vsub.s32 0, %v51
  %v53 = vrot.slane %v49, %v52
  %v54 = vmul.f32 %v48, %v53
  %v55 = vrot.slane %v18, 5
  %vm56 = vcmp.ge.s32.totalorder %v11, 3
  %v57 = vsel %vm56, %v55, 0.0
  %v58 = vld [vmem:[%s0 + $0x1c] sm:$0x1]
  %v59 = vlaneseq
  %v60 = vshrl.u32 %v59, 7
  %v61 = vsub.s32 0, %v60
  %v62 = vrot.slane %v58, %v61
  %v63 = vmul.f32 %v57, %v62
  %v64 = vadd.f32 %v27, %v63
  %v65 = vrot.slane %v18, 6
  %vm66 = vcmp.ge.s32.totalorder %v11, 2
  %v67 = vsel %vm66, %v65, 0.0
  %v68 = vld [vmem:[%s0 + $0x1d] sm:$0x1]
  %v69 = vlaneseq
  %v70 = vshrl.u32 %v69, 7
  %v71 = vsub.s32 0, %v70
  %v72 = vrot.slane %v68, %v71
  %v73 = vmul.f32 %v67, %v72
  %v74 = vadd.f32 %v36, %v73
  %v75 = vrot.slane %v18, 7
  %vm76 = vcmp.ge.s32.totalorder %v11, 1
  %v77 = vsel %vm76, %v75, 0.0
  %v78 = vld [vmem:[%s0 + $0x1e] sm:$0x1]
  %v79 = vlaneseq
  %v80 = vshrl.u32 %v79, 7
  %v81 = vsub.s32 0, %v80
  %v82 = vrot.slane %v78, %v81
  %v83 = vmul.f32 %v77, %v82
  %v84 = vadd.f32 %v45, %v83
  %v85 = vld [vmem:[%s0 + $0x1f] sm:$0x1]
  %v86 = vlaneseq
  %v87 = vshrl.u32 %v86, 7
  %v88 = vsub.s32 0, %v87
  %v89 = vrot.slane %v85, %v88
  %v90 = vmul.f32 %v18, %v89
  %v91 = vadd.f32 %v54, %v90
  %vm92 = vcmp.lt.s32.totalorder %v11, 7
  %v93 = vsel %vm92, %v19, 0.0
  %v94 = vld [vmem:[%s0 + $0x20] sm:$0x1]
  %v95 = vlaneseq
  %v96 = vshrl.u32 %v95, 7
  %v97 = vsub.s32 0, %v96
  %v98 = vrot.slane %v94, %v97
  %v99 = vmul.f32 %v93, %v98
  %v100 = vadd.f32 %v64, %v99
  %vm101 = vcmp.lt.s32.totalorder %v11, 6
  %v102 = vsel %vm101, %v28, 0.0
  %v103 = vld [vmem:[%s0 + $0x21] sm:$0x1]
  %v104 = vlaneseq
  %v105 = vshrl.u32 %v104, 7
  %v106 = vsub.s32 0, %v105
  %v107 = vrot.slane %v103, %v106
  %v108 = vmul.f32 %v102, %v107
  %v109 = vadd.f32 %v74, %v108
  %vm110 = vcmp.lt.s32.totalorder %v11, 5
  %v111 = vsel %vm110, %v37, 0.0
  %v112 = vld [vmem:[%s0 + $0x22] sm:$0x1]
  %v113 = vlaneseq
  %v114 = vshrl.u32 %v113, 7
  %v115 = vsub.s32 0, %v114
  %v116 = vrot.slane %v112, %v115
  %v117 = vmul.f32 %v111, %v116
  %v118 = vadd.f32 %v84, %v117
  %vm119 = vcmp.lt.s32.totalorder %v11, 4
  %v120 = vsel %vm119, %v46, 0.0
  %v121 = vld [vmem:[%s0 + $0x23] sm:$0x1]
  %v122 = vlaneseq
  %v123 = vshrl.u32 %v122, 7
  %v124 = vsub.s32 0, %v123
  %v125 = vrot.slane %v121, %v124
  %v126 = vmul.f32 %v120, %v125
  %v127 = vadd.f32 %v91, %v126
  %vm128 = vcmp.lt.s32.totalorder %v11, 3
  %v129 = vsel %vm128, %v55, 0.0
  %v130 = vld [vmem:[%s0 + $0x24] sm:$0x1]
  %v131 = vlaneseq
  %v132 = vshrl.u32 %v131, 7
  %v133 = vsub.s32 0, %v132
  %v134 = vrot.slane %v130, %v133
  %v135 = vmul.f32 %v129, %v134
  %v136 = vadd.f32 %v100, %v135
  %vm137 = vcmp.lt.s32.totalorder %v11, 2
  %v138 = vsel %vm137, %v65, 0.0
  %v139 = vld [vmem:[%s0 + $0x25] sm:$0x1]
  %v140 = vlaneseq
  %v141 = vshrl.u32 %v140, 7
  %v142 = vsub.s32 0, %v141
  %v143 = vrot.slane %v139, %v142
  %v144 = vmul.f32 %v138, %v143
  %v145 = vadd.f32 %v109, %v144
  %vm146 = vcmp.lt.s32.totalorder %v11, 1
  %v147 = vsel %vm146, %v75, 0.0
  %v148 = vld [vmem:[%s0 + $0x26] sm:$0x1]
  %v149 = vlaneseq
  %v150 = vshrl.u32 %v149, 7
  %v151 = vsub.s32 0, %v150
  %v152 = vrot.slane %v148, %v151
  %v153 = vmul.f32 %v147, %v152
  %v154 = vadd.f32 %v118, %v153
  %v155 = vadd.f32 %v136, %v145
  %v156 = vadd.f32 %v154, %v127
  %v157 = vadd.f32 %v155, %v156
  %158 = vrot.lane.b32.xlu0 %v157, 127
  %v159 = vpop.permute.xlu0 %158
  %160 = vrot.lane.b32.xlu0 %v157, 1
  %v161 = vpop.permute.xlu0 %160
  %v162 = vsel %vm15, %v159, %v161
  %163 = vrot.lane.b32.xlu0 %v162, 96
  %v164 = vpop.permute.xlu0 %163
  %v165 = vadd.f32 %v157, %v164
  %v166 = vld [vmem:[%s0 + $0x4e] sm:$0x1]
  %v167 = vlaneseq
  %v168 = vshrl.u32 %v167, 7
  %v169 = vsub.s32 0, %v168
  %v170 = vrot.slane %v166, %v169
  %v171 = vadd.f32 %v165, %v170
  %v172 = vmin.f32 %v171, 20.0
  %v173 = vmul.f32 %v172, 1.442695
  %v174 = vpow.pop %v173
  %v175 = vadd.f32 %v174, 1.0
  %v176 = vmul.f32 %v175, %v175
  %v177 = vadd.f32 %v176, 1.0
  %v178 = vrcp.pop %v177
  %v179 = vmul.f32 %v177, %v178
  %v180 = vsub.f32 2.0, %v179
  %v181 = vmul.f32 %v178, %v180
  %v182 = vmul.f32 %v181, 2.0
  %v183 = vsub.f32 1.0, %v182
  %v184 = vmul.f32 %v171, %v183
  %185 = vrot.lane.b32.xlu0 %v184, 32
  %v186 = vpop.permute.xlu0 %185
  %v187 = vsel %vm13, %v184, %v186
  %v188 = vrot.slane %v187, 1
  %v189 = vsel %vm20, %v188, 0.0
  %v190 = vld [vmem:[%s0 + $0x37] sm:$0x1]
  %v191 = vlaneseq
  %v192 = vshrl.u32 %v191, 7
  %v193 = vsub.s32 0, %v192
  %v194 = vrot.slane %v190, %v193
  %v195 = vmul.f32 %v189, %v194
  %v196 = vrot.slane %v187, 2
  %v197 = vsel %vm29, %v196, 0.0
  %v198 = vld [vmem:[%s0 + $0x38] sm:$0x1]
  %v199 = vlaneseq
  %v200 = vshrl.u32 %v199, 7
  %v201 = vsub.s32 0, %v200
  %v202 = vrot.slane %v198, %v201
  %v203 = vmul.f32 %v197, %v202
  %v204 = vrot.slane %v187, 3
  %v205 = vsel %vm38, %v204, 0.0
  %v206 = vld [vmem:[%s0 + $0x39] sm:$0x1]
  %v207 = vlaneseq
  %v208 = vshrl.u32 %v207, 7
  %v209 = vsub.s32 0, %v208
  %v210 = vrot.slane %v206, %v209
  %v211 = vmul.f32 %v205, %v210
  %v212 = vrot.slane %v187, 4
  %v213 = vsel %vm47, %v212, 0.0
  %v214 = vld [vmem:[%s0 + $0x3a] sm:$0x1]
  %v215 = vlaneseq
  %v216 = vshrl.u32 %v215, 7
  %v217 = vsub.s32 0, %v216
  %v218 = vrot.slane %v214, %v217
  %v219 = vmul.f32 %v213, %v218
  %v220 = vrot.slane %v187, 5
  %v221 = vsel %vm56, %v220, 0.0
  %v222 = vld [vmem:[%s0 + $0x3b] sm:$0x1]
  %v223 = vlaneseq
  %v224 = vshrl.u32 %v223, 7
  %v225 = vsub.s32 0, %v224
  %v226 = vrot.slane %v222, %v225
  %v227 = vmul.f32 %v221, %v226
  %v228 = vadd.f32 %v195, %v227
  %v229 = vrot.slane %v187, 6
  %v230 = vsel %vm66, %v229, 0.0
  %v231 = vld [vmem:[%s0 + $0x3c] sm:$0x1]
  %v232 = vlaneseq
  %v233 = vshrl.u32 %v232, 7
  %v234 = vsub.s32 0, %v233
  %v235 = vrot.slane %v231, %v234
  %v236 = vmul.f32 %v230, %v235
  %v237 = vadd.f32 %v203, %v236
  %v238 = vrot.slane %v187, 7
  %v239 = vsel %vm76, %v238, 0.0
  %v240 = vld [vmem:[%s0 + $0x3d] sm:$0x1]
  %v241 = vlaneseq
  %v242 = vshrl.u32 %v241, 7
  %v243 = vsub.s32 0, %v242
  %v244 = vrot.slane %v240, %v243
  %v245 = vmul.f32 %v239, %v244
  %v246 = vadd.f32 %v211, %v245
  %v247 = vld [vmem:[%s0 + $0x3e] sm:$0x1]
  %v248 = vlaneseq
  %v249 = vshrl.u32 %v248, 7
  %v250 = vsub.s32 0, %v249
  %v251 = vrot.slane %v247, %v250
  %v252 = vmul.f32 %v187, %v251
  %v253 = vadd.f32 %v219, %v252
  %v254 = vsel %vm92, %v188, 0.0
  %v255 = vld [vmem:[%s0 + $0x3f] sm:$0x1]
  %v256 = vlaneseq
  %v257 = vshrl.u32 %v256, 7
  %v258 = vsub.s32 0, %v257
  %v259 = vrot.slane %v255, %v258
  %v260 = vmul.f32 %v254, %v259
  %v261 = vadd.f32 %v228, %v260
  %v262 = vsel %vm101, %v196, 0.0
  %v263 = vld [vmem:[%s0 + $0x40] sm:$0x1]
  %v264 = vlaneseq
  %v265 = vshrl.u32 %v264, 7
  %v266 = vsub.s32 0, %v265
  %v267 = vrot.slane %v263, %v266
  %v268 = vmul.f32 %v262, %v267
  %v269 = vadd.f32 %v237, %v268
  %v270 = vsel %vm110, %v204, 0.0
  %v271 = vld [vmem:[%s0 + $0x41] sm:$0x1]
  %v272 = vlaneseq
  %v273 = vshrl.u32 %v272, 7
  %v274 = vsub.s32 0, %v273
  %v275 = vrot.slane %v271, %v274
  %v276 = vmul.f32 %v270, %v275
  %v277 = vadd.f32 %v246, %v276
  %v278 = vsel %vm119, %v212, 0.0
  %v279 = vld [vmem:[%s0 + $0x42] sm:$0x1]
  %v280 = vlaneseq
  %v281 = vshrl.u32 %v280, 7
  %v282 = vsub.s32 0, %v281
  %v283 = vrot.slane %v279, %v282
  %v284 = vmul.f32 %v278, %v283
  %v285 = vadd.f32 %v253, %v284
  %v286 = vsel %vm128, %v220, 0.0
  %v287 = vld [vmem:[%s0 + $0x43] sm:$0x1]
  %v288 = vlaneseq
  %v289 = vshrl.u32 %v288, 7
  %v290 = vsub.s32 0, %v289
  %v291 = vrot.slane %v287, %v290
  %v292 = vmul.f32 %v286, %v291
  %v293 = vadd.f32 %v261, %v292
  %v294 = vsel %vm137, %v229, 0.0
  %v295 = vld [vmem:[%s0 + $0x44] sm:$0x1]
  %v296 = vlaneseq
  %v297 = vshrl.u32 %v296, 7
  %v298 = vsub.s32 0, %v297
  %v299 = vrot.slane %v295, %v298
  %v300 = vmul.f32 %v294, %v299
  %v301 = vadd.f32 %v269, %v300
  %v302 = vsel %vm146, %v238, 0.0
  %v303 = vld [vmem:[%s0 + $0x45] sm:$0x1]
  %v304 = vlaneseq
  %v305 = vshrl.u32 %v304, 7
  %v306 = vsub.s32 0, %v305
  %v307 = vrot.slane %v303, %v306
  %v308 = vmul.f32 %v302, %v307
  %v309 = vadd.f32 %v277, %v308
  %v310 = vadd.f32 %v293, %v301
  %v311 = vadd.f32 %v309, %v285
  %v312 = vadd.f32 %v310, %v311
  %313 = vrot.lane.b32.xlu0 %v312, 127
  %v314 = vpop.permute.xlu0 %313
  %315 = vrot.lane.b32.xlu0 %v312, 1
  %v316 = vpop.permute.xlu0 %315
  %v317 = vsel %vm15, %v314, %v316
  %318 = vrot.lane.b32.xlu0 %v317, 96
  %v319 = vpop.permute.xlu0 %318
  %v320 = vadd.f32 %v312, %v319
  %v321 = vld [vmem:[%s0 + $0x4f] sm:$0x1]
  %v322 = vlaneseq
  %v323 = vshrl.u32 %v322, 7
  %v324 = vsub.s32 0, %v323
  %v325 = vrot.slane %v321, %v324
  %v326 = vadd.f32 %v320, %v325
  %v327 = vmin.f32 %v326, 20.0
  %v328 = vmul.f32 %v327, 1.442695
  %v329 = vpow.pop %v328
  %v330 = vadd.f32 %v329, 1.0
  %v331 = vmul.f32 %v330, %v330
  %v332 = vadd.f32 %v331, 1.0
  %v333 = vrcp.pop %v332
  %v334 = vmul.f32 %v332, %v333
  %v335 = vsub.f32 2.0, %v334
  %v336 = vmul.f32 %v333, %v335
  %v337 = vmul.f32 %v336, 2.0
  %v338 = vsub.f32 1.0, %v337
  %v339 = vmul.f32 %v326, %v338
  %v340 = vmul.f32 %v339, %v16
  %341 = vst [vmem:[%s1] sm:$0xff] %v340
  // Predicated region
  $region6: #{conv_position_embedding.1} parent=0 // pred_check
    _
  $region7: #{conv_position_embedding.1} parent=0 // pred_check_branch
    %343 = sbr.rel (0) target = $region9
  $region8: #{conv_position_embedding.1} parent=0 // pred_region
    _
  $region9: #{conv_position_embedding.1} parent=0 // pred_fallthru
    _
  // Predicated region
  $region10: #{conv_position_embedding.1} parent=0 // pred_check
    _
  $region11: #{conv_position_embedding.1} parent=0 // pred_check_branch
    %345 = sbr.rel (0) target = $region13
  $region12: #{conv_position_embedding.1} parent=0 // pred_region
    _
  $region13: #{conv_position_embedding.1} parent=0 // pred_fallthru
    _

</llo_original>
